<compile_context>
chip_gen: v6e
topology: v6e:2x2x1
jax: 0.10.0
libtpu: 0.0.40
codegen_flags: <defaults>
</compile_context>

<pallas_src>
import functools

import jax
import jax.numpy as jnp
from jax import lax
from jax.experimental import pallas as pl
from jax.experimental.pallas import tpu as pltpu

EPS = 1e-5


def _round_up(x, m):
    return ((x + m - 1) // m) * m


# ----------------------------------------------------------------------------
# Pallas kernel 1: fused (im2col) matmul + per-output-channel affine + activation
# Single full-K / full-N pass; grid only over M.
# ----------------------------------------------------------------------------
def _mm_affine_act_kernel(p_ref, w_ref, s_ref, b_ref, o_ref, *, act):
    z = jnp.dot(p_ref[...], w_ref[...], preferred_element_type=jnp.float32)
    z = z * s_ref[...] + b_ref[...]
    if act == "elu":
        z = jnp.where(z > 0, z, jnp.expm1(jnp.minimum(z, 0.0)))
    elif act == "sigmoid":
        z = jax.nn.sigmoid(z)
    o_ref[...] = z.astype(o_ref.dtype)


def fused_matmul(p, w, scale, bias, act):
    """out[:M,:N] = act((p @ w) * scale + bias), in one Pallas kernel pass."""
    M, K = p.shape
    _, N = w.shape
    Kp = _round_up(K, 128)
    Np = _round_up(N, 128)
    Mp = _round_up(M, 16)                      # bf16 sublane packing = 16
    TM = Mp if Mp <= 256 else 256              # >=2 M-tiles only for big layers
    Mp = _round_up(Mp, TM)

    # bf16 MXU operands; accumulation + epilogue stay f32.
    p_pad = jnp.pad(p, ((0, Mp - M), (0, Kp - K))).astype(jnp.bfloat16)
    w_pad = jnp.pad(w, ((0, Kp - K), (0, Np - N))).astype(jnp.bfloat16)
    s_pad = jnp.pad(scale, (0, Np - N)).reshape(1, Np).astype(jnp.float32)
    b_pad = jnp.pad(bias, (0, Np - N)).reshape(1, Np).astype(jnp.float32)

    cost = pl.CostEstimate(
        flops=2 * Mp * Kp * Np,
        transcendentals=Mp * Np if act in ("elu", "sigmoid") else 0,
        bytes_accessed=(p_pad.size + w_pad.size) * 2
        + (s_pad.size + b_pad.size) * 4 + Mp * Np * 4,
    )

    out = pl.pallas_call(
        functools.partial(_mm_affine_act_kernel, act=act),
        out_shape=jax.ShapeDtypeStruct((Mp, Np), jnp.float32),
        grid=(Mp // TM,),
        in_specs=[
            pl.BlockSpec((TM, Kp), lambda i: (i, 0)),
            pl.BlockSpec((Kp, Np), lambda i: (0, 0)),
            pl.BlockSpec((1, Np), lambda i: (0, 0)),
            pl.BlockSpec((1, Np), lambda i: (0, 0)),
        ],
        out_specs=pl.BlockSpec((TM, Np), lambda i: (i, 0)),
        compiler_params=pltpu.CompilerParams(
            dimension_semantics=("parallel",),
            vmem_limit_bytes=32 * 1024 * 1024),
        cost_estimate=cost,
    )(p_pad, w_pad, s_pad, b_pad)
    return out[:M, :N]


# ----------------------------------------------------------------------------
# Pallas kernel 2: ECA channel attention fused with decoder1's leading BatchNorm.
# The k=3 1D conv over channels (zero-padded) is a tridiagonal (C,C) matmul,
# so no negative rolls / boundary masks are needed.
# ----------------------------------------------------------------------------
def _eca_bn_kernel(x_ref, t_ref, s_ref, b_ref, o_ref):
    x = x_ref[...]                                     # (B, HW, C)
    y = jnp.mean(x, axis=1)                            # (B, C) global avg pool
    att = jax.nn.sigmoid(
        jnp.dot(y, t_ref[...], preferred_element_type=jnp.float32))   # (B, C)
    out = x * att[:, None, :]
    # decoder1's leading BatchNorm (inference-mode affine), folded here
    o_ref[...] = out * s_ref[...][None] + b_ref[...][None]


def eca_bn(x_nhwc, eca_w, bn_scale, bn_bias):
    B, H, W, C = x_nhwc.shape
    x = x_nhwc.reshape(B, H * W, C).astype(jnp.float32)
    # Tridiagonal matrix T so that (y @ T)[c] = w0*y[c-1] + w1*y[c] + w2*y[c+1]
    # with implicit zero padding at the channel boundaries.
    T = (eca_w[0] * jnp.eye(C, k=1, dtype=jnp.float32)
         + eca_w[1] * jnp.eye(C, k=0, dtype=jnp.float32)
         + eca_w[2] * jnp.eye(C, k=-1, dtype=jnp.float32))
    cost = pl.CostEstimate(
        flops=2 * B * C * C + 4 * B * H * W * C,
        transcendentals=B * C,
        bytes_accessed=2 * x.size * 4 + T.size * 4 + 2 * C * 4,
    )
    out = pl.pallas_call(
        _eca_bn_kernel,
        out_shape=jax.ShapeDtypeStruct((B, H * W, C), jnp.float32),
        in_specs=[pl.BlockSpec(memory_space=pltpu.MemorySpace.VMEM)] * 4,
        out_specs=pl.BlockSpec(memory_space=pltpu.MemorySpace.VMEM),
        cost_estimate=cost,
    )(x, T, bn_scale.reshape(1, C), bn_bias.reshape(1, C))
    return out.reshape(B, H, W, C)


# ----------------------------------------------------------------------------
# Conv glue: im2col patch extraction / transposed-conv dilation (plain JAX)
# TODO(synk): fusing im2col / adjacent layers into one pallas_call would remove
#             the 9x-amplified patch HBM round trip at large batch/resolution.
# ----------------------------------------------------------------------------
def im2col(x_nhwc, kh, kw, stride, pad):
    if pad:
        x_nhwc = jnp.pad(x_nhwc, ((0, 0), (pad, pad), (pad, pad), (0, 0)))
    B, H, W, C = x_nhwc.shape
    oh = (H - kh) // stride + 1
    ow = (W - kw) // stride + 1
    cols = []
    for i in range(kh):
        for j in range(kw):
            cols.append(x_nhwc[:, i:i + stride * (oh - 1) + 1:stride,
                               j:j + stride * (ow - 1) + 1:stride, :])
    p = jnp.concatenate(cols, axis=-1)             # (B, oh, ow, kh*kw*C)
    return p.reshape(B * oh * ow, kh * kw * C), oh, ow


def dilate_for_convT(x_nhwc, stride, k, pad, out_pad):
    B, H, W, C = x_nhwc.shape
    Hd, Wd = (H - 1) * stride + 1, (W - 1) * stride + 1
    y = jnp.zeros((B, Hd, Wd, C), x_nhwc.dtype)
    y = y.at[:, ::stride, ::stride, :].set(x_nhwc)
    p0 = k - 1 - pad
    p1 = k - 1 - pad + out_pad
    return jnp.pad(y, ((0, 0), (p0, p1), (p0, p1), (0, 0)))


def conv2d_fused(x_nhwc, w_oihw, b, scale, bias_extra, stride, pad, act):
    Cout, Cin, KH, KW = w_oihw.shape
    patches, OH, OW = im2col(x_nhwc, KH, KW, stride, pad)
    wm = jnp.transpose(w_oihw, (2, 3, 1, 0)).reshape(KH * KW * Cin, Cout)
    out = fused_matmul(patches, wm, scale, b * scale + bias_extra, act)
    return out.reshape(x_nhwc.shape[0], OH, OW, Cout)


def convT2d_fused(x_nhwc, w_iohw, b, scale, bias_extra, stride, pad, out_pad, act):
    Cin, Cout, KH, KW = w_iohw.shape
    xd = dilate_for_convT(x_nhwc, stride, KH, pad, out_pad)
    w_eff = jnp.transpose(jnp.flip(w_iohw, axis=(2, 3)),
                          (2, 3, 0, 1)).reshape(KH * KW * Cin, Cout)
    patches, OH, OW = im2col(xd, KH, KW, 1, 0)
    out = fused_matmul(patches, w_eff, scale, b * scale + bias_extra, act)
    return out.reshape(x_nhwc.shape[0], OH, OW, Cout)


def bn_affine(bn):
    scale = bn["gamma"] * lax.rsqrt(bn["var"] + EPS)
    bias = bn["beta"] - bn["mean"] * scale
    return scale, bias


# ----------------------------------------------------------------------------
# Parameter construction (deterministic, synthetic)
# ----------------------------------------------------------------------------
def init_params(key):
    ks = iter(jax.random.split(key, 64))

    def w(shape, std=0.05):
        return std * jax.random.normal(next(ks), shape, jnp.float32)

    def bn(c):
        return dict(
            gamma=jax.random.uniform(next(ks), (c,), jnp.float32, 0.5, 1.5),
            beta=0.1 * jax.random.normal(next(ks), (c,), jnp.float32),
            mean=0.1 * jax.random.normal(next(ks), (c,), jnp.float32),
            var=jax.random.uniform(next(ks), (c,), jnp.float32, 0.5, 1.5),
        )

    return dict(
        ca_w=w((384, 128, 1, 1)), ca_b=w((384,)),
        e1_w=w((128, 384, 3, 3)), e1_b=w((128,)), bn1=bn(128),
        e2_w=w((128, 128, 3, 3)), e2_b=w((128,)), bn2=bn(128),
        e3_w=w((64, 128, 3, 3)), e3_b=w((64,)), bn3=bn(64),
        eca_w=w((3,), std=0.3),
        bn_d1_pre=bn(64),
        d1_w=w((64, 128, 3, 3)), d1_b=w((128,)), bn_d1=bn(128),
        d2_w=w((128, 384, 3, 3)), d2_b=w((384,)), bn_d2=bn(384),
        out_w=w((384, 3, 3, 3)), out_b=w((3,)), bn_out=bn(3),
    )


# ----------------------------------------------------------------------------
# Forward pass (mirrors LegacyAutoencoder_Decoder.forward)
# ----------------------------------------------------------------------------
def decoder_forward(p, x_nchw, residualEnc1, residualEnc2):
    del residualEnc1, residualEnc2        # accepted but unused (as in PyTorch forward)
    x = jnp.transpose(x_nchw, (0, 2, 3, 1)).astype(jnp.float32)   # NCHW -> NHWC

    # channel_adj: Conv2d(128, 384, k=1)
    c = p["ca_w"].shape[0]
    x = conv2d_fused(x, p["ca_w"], p["ca_b"], jnp.ones((c,), jnp.float32),
                     jnp.zeros((c,), jnp.float32), stride=1, pad=0, act=None)

    # encoder1/2/3: Conv(k3,s2,p1) + BN + ELU
    s, b = bn_affine(p["bn1"])
    x = conv2d_fused(x, p["e1_w"], p["e1_b"], s, b, stride=2, pad=1, act="elu")
    s, b = bn_affine(p["bn2"])
    x = conv2d_fused(x, p["e2_w"], p["e2_b"], s, b, stride=2, pad=1, act="elu")
    s, b = bn_affine(p["bn3"])
    x = conv2d_fused(x, p["e3_w"], p["e3_b"], s, b, stride=2, pad=1, act="elu")

    # TODO(synk): KANCL is not defined in the reference source; treated as identity.

    # ECA_Net(64) fused with decoder1's leading BatchNorm2d(64)
    s0, b0 = bn_affine(p["bn_d1_pre"])
    x = eca_bn(x, p["eca_w"], s0, b0)

    # decoder1: ConvTranspose2d(64,128,k3,p1,s2,op1) + BN + ELU
    s, b = bn_affine(p["bn_d1"])
    x = convT2d_fused(x, p["d1_w"], p["d1_b"], s, b, 2, 1, 1, act="elu")
    # decoder2: ConvTranspose2d(128,384,...) + BN + ELU
    s, b = bn_affine(p["bn_d2"])
    x = convT2d_fused(x, p["d2_w"], p["d2_b"], s, b, 2, 1, 1, act="elu")
    # Output_Layer: ConvTranspose2d(384,3,...) + BN + Sigmoid
    s, b = bn_affine(p["bn_out"])
    x = convT2d_fused(x, p["out_w"], p["out_b"], s, b, 2, 1, 1, act="sigmoid")

    # TODO(synk): reconstruction KANCL is not defined in the reference source; identity.

    return jnp.transpose(x, (0, 3, 1, 2))          # NHWC -> NCHW


if __name__ == "__main__":
    key = jax.random.PRNGKey(0)
    pkey, xkey, r1key, r2key = jax.random.split(key, 4)
    params = init_params(pkey)

    B, H, W = 2, 16, 16
    x = jax.random.normal(xkey, (B, 128, H, W), jnp.float32)
    residualEnc1 = jax.random.normal(r1key, (B, 128, H, W), jnp.float32)  # unused
    residualEnc2 = jax.random.normal(r2key, (B, 384, H, W), jnp.float32)  # unused

    out = decoder_forward(params, x, residualEnc1, residualEnc2)
    out = jax.block_until_ready(out)
    assert out.shape == (B, 3, H, W), out.shape
    assert bool(jnp.all(jnp.isfinite(out)))
    assert bool(jnp.all((out >= 0.0) & (out <= 1.0)))   # sigmoid output
    print("KERNEL_OK")
</pallas_src>

<mosaic_0001>
module attributes {stable_mosaic.version = 11 : i64} {
  func.func @_mm_affine_act_kernel(%arg0: i32, %arg1: memref<256x128xbf16, #tpu.memory_space<vmem>>, %arg2: memref<128x384xbf16, #tpu.memory_space<vmem>>, %arg3: memref<1x384xf32, #tpu.memory_space<vmem>>, %arg4: memref<1x384xf32, #tpu.memory_space<vmem>>, %arg5: memref<256x384xf32, #tpu.memory_space<vmem>>) attributes {dimension_semantics = [#tpu.dimension_semantics<parallel>], iteration_bounds = array<i64: 2>, scalar_prefetch = 0 : i64, scratch_operands = 0 : i64, tpu.core_type = #tpu.core_type<tc>, window_params = [{transform_indices = @transform_0, window_bounds = array<i64: 256, 128>}, {pipeline_mode = #tpu.pipeline_mode<synchronous>, transform_indices = @transform_1, window_bounds = array<i64: 128, 384>}, {pipeline_mode = #tpu.pipeline_mode<synchronous>, transform_indices = @transform_2, window_bounds = array<i64: 1, 384>}, {pipeline_mode = #tpu.pipeline_mode<synchronous>, transform_indices = @transform_3, window_bounds = array<i64: 1, 384>}, {transform_indices = @transform_4, window_bounds = array<i64: 256, 384>}]} {
    %c0 = arith.constant 0 : index
    %c0_0 = arith.constant 0 : index
    %0 = vector.load %arg1[%c0, %c0_0] : memref<256x128xbf16, #tpu.memory_space<vmem>>, vector<256x128xbf16>
    %c0_1 = arith.constant 0 : index
    %c0_2 = arith.constant 0 : index
    %1 = vector.load %arg2[%c0_1, %c0_2] : memref<128x384xbf16, #tpu.memory_space<vmem>>, vector<128x384xbf16>
    %cst = arith.constant dense<0.000000e+00> : vector<256x384xf32>
    %2 = tpu.matmul %0, %1, %cst {dimension_numbers = #tpu.dot_dimension_numbers<[1], [0], [0], [1], [0, 0, 1, 1], [], []>} : vector<256x128xbf16>, vector<128x384xbf16>, vector<256x384xf32> -> vector<256x384xf32>
    %c0_3 = arith.constant 0 : index
    %c0_4 = arith.constant 0 : index
    %3 = vector.load %arg3[%c0_3, %c0_4] : memref<1x384xf32, #tpu.memory_space<vmem>>, vector<1x384xf32>
    %4 = vector.broadcast %3 : vector<1x384xf32> to vector<256x384xf32>
    %5 = arith.mulf %2, %4 : vector<256x384xf32>
    %c0_5 = arith.constant 0 : index
    %c0_6 = arith.constant 0 : index
    %6 = vector.load %arg4[%c0_5, %c0_6] : memref<1x384xf32, #tpu.memory_space<vmem>>, vector<1x384xf32>
    %7 = vector.broadcast %6 : vector<1x384xf32> to vector<256x384xf32>
    %8 = arith.addf %5, %7 : vector<256x384xf32>
    %c0_7 = arith.constant 0 : index
    %c0_8 = arith.constant 0 : index
    %9 = vector.load %arg5[%c0_7, %c0_8] : memref<256x384xf32, #tpu.memory_space<vmem>>, vector<256x384xf32>
    tpu.vector_store %arg5[%c0_7, %c0_8], %8 {strides = array<i32>} : memref<256x384xf32, #tpu.memory_space<vmem>>, vector<256x384xf32>,
    return
  }
  func.func @transform_0(%arg0: i32) -> (i32, i32) {
    %c0_i32 = arith.constant 0 : i32
    %c0_i32_0 = arith.constant 0 : i32
    return %arg0, %c0_i32 : i32, i32
  }
  func.func @transform_1(%arg0: i32) -> (i32, i32) {
    %c0_i32 = arith.constant 0 : i32
    %c0_i32_0 = arith.constant 0 : i32
    %c0_i32_1 = arith.constant 0 : i32
    return %c0_i32, %c0_i32_0 : i32, i32
  }
  func.func @transform_2(%arg0: i32) -> (i32, i32) {
    %c0_i32 = arith.constant 0 : i32
    %c0_i32_0 = arith.constant 0 : i32
    %c0_i32_1 = arith.constant 0 : i32
    return %c0_i32, %c0_i32_0 : i32, i32
  }
  func.func @transform_3(%arg0: i32) -> (i32, i32) {
    %c0_i32 = arith.constant 0 : i32
    %c0_i32_0 = arith.constant 0 : i32
    %c0_i32_1 = arith.constant 0 : i32
    return %c0_i32, %c0_i32_0 : i32, i32
  }
  func.func @transform_4(%arg0: i32) -> (i32, i32) {
    %c0_i32 = arith.constant 0 : i32
    %c0_i32_0 = arith.constant 0 : i32
    return %arg0, %c0_i32 : i32, i32
  }
}

</mosaic_0001>

<llo_original>
// kernel: tpu_custom_call.1
$region0: #{tpu_custom_call.1}
  #allocation0 [shape = 'u32[]', space=smem, size = 0x4, offset = 0x4, fixed_abs, tag = 'smem constant byte address 0x4 - core index']
  #allocation1 [shape = 'u32[144,128]{1,0:T(1,128)}', space=vmem, size = 0x12000, scoped, tag = 'internal scratch']
  %s0 = inlined_call_operand.hbm [shape: bf16[512,128], index: 0, kind: input, shape index: {}]
  %s1 = inlined_call_operand.hbm [shape: bf16[128,384], index: 1, kind: input, shape index: {}]
  %s2 = inlined_call_operand.vmem [shape: f32[1,384], index: 2, kind: input, shape index: {}]
  %s3 = inlined_call_operand.hbm [shape: f32[1,384], index: 3, kind: input, shape index: {}]
  %s4 = inlined_call_operand.hbm [shape: f32[512,384], index: 4, kind: output, shape index: {}]
  %s5 = sld [smem:[#allocation0]]
  $region61: #{tpu_custom_call.1} parent=0
    _
  %s7 = ssub.s32 1, %s5
  %s8 = scalar_select 0, %s7, %s5
  $region1: #{tpu_custom_call.1} parent=0
    #allocation2 [shape = 'u8[131072]{0}', space=vmem, size = 0x20000, scoped, tag = 'input window, operand 0']
    #allocation3 [shape = 's32[2]{0}', space=sflag, size = 0x8, scoped, tag = 'scoped memory for tpu_custom_call.1']
    #allocation4 [shape = 's32[2]{0}', space=sflag, size = 0x8, scoped, tag = 'scoped memory for tpu_custom_call.1']
    #allocation5 [shape = 'u8[98304]{0}', space=vmem, size = 0x18000, scoped, tag = 'input window, operand 1, single buffered']
    #allocation6 [shape = 's32[1]{0}', space=sflag, size = 0x4, scoped, tag = 'scoped memory for tpu_custom_call.1']
    #allocation7 [shape = 'u8[1536]{0}', space=vmem, size = 0x800, scoped, tag = 'input window, operand 3, single buffered']
    #allocation8 [shape = 'u8[786432]{0}', space=vmem, size = 0xc0000, scoped, tag = 'output window, operand 0']
    %9 = vsyncpa [#allocation3], 0
    %s10 = scalar_lea.sflag [#allocation3], 1
    %11 = vsyncpa %s10, 0
    %12 = vsyncpa [#allocation6], 0
    %13 = vsyncpa [#allocation4], 0
    %s14 = scalar_lea.sflag [#allocation4], 1
    %15 = vsyncpa %s14, 0
    loop: start=0, step=1, limit=4
    $region2: #{tpu_custom_call.1} parent=1 // loop_pre_header
      _
    $region3: #{tpu_custom_call.1} parent=1 // loop_header
      %s17 = sphi 0, %s21
      %p18 = scmp.ge.s32.totalorder %s17, 4
      %s27 = sphi 0, %s29
      %s30 = sphi 0, %s27
      %s31 = sphi 0, %s30
      %s47 = sphi 0, %s31
      %s51 = sphi 0, %s51
      %s53 = sphi 0, %s51
      %s54 = sphi 0, %s53
      %s68 = sphi 0, %s54
      %s72 = sphi 0, %s72
      %s74 = sphi 0, %s72
      %s75 = sphi 0, %s74
      %s89 = sphi 0, %s75
      %s93 = sphi 0, %s93
      %s95 = sphi 0, %s93
      %s96 = sphi 0, %s95
      %s110 = sphi 0, %s96
      %s116 = sphi 0, %s118
      %s119 = sphi 0, %s116
      %s120 = sphi 0, %s119
      %s136 = sphi 0, %s120
    $region4: #{tpu_custom_call.1} parent=1 // loop_header_branch
      %20 = sbr.rel (%p18) target = $region8
    $region5: #{tpu_custom_call.1} parent=1 // loop_body
      %s22 = ssub.s32 %s17, 1
      %s23 = ssub.s32 %s17, 2
      %s24 = sadd.s32 %s17, 1
      %s25 = ssub.s32 %s17, %s24
      %p26 = scmp.eq.s32.totalorder %s25, 0
      %s28 = sadd.s32 %s27, 1
      %s29 = scalar_select %p26, %s27, %s28
      %p32 = pneg %p26
      %p33 = scmp.eq.s32.totalorder %s17, 1
      %p34 = por %p32, %p33
      %p35 = scmp.ne.s32.totalorder %s27, %s30
      %p36 = scmp.eq.s32.totalorder %s17, 0
      %p37 = por %p35, %p36
      %p38 = scmp.ne.s32.totalorder %s27, %s30
      %p39 = scmp.eq.s32.totalorder %s22, 1
      %p40 = por %p38, %p39
      %p41 = scmp.ne.s32.totalorder %s30, %s31
      %p42 = scmp.eq.s32.totalorder %s22, 0
      %p43 = por %p41, %p42
      %p44 = scmp.ne.s32.totalorder %s30, %s31
      %p45 = scmp.eq.s32.totalorder %s23, 1
      %p46 = por %p44, %p45
      %p48 = scmp.ne.s32.totalorder %s31, %s47
      %p49 = scmp.eq.s32.totalorder %s23, 0
      %p50 = por %p48, %p49
      %s52 = sadd.s32 %s51, 1
      %p55 = scmp.eq.s32.totalorder %s17, 1
      %p56 = scmp.ne.s32.totalorder %s51, %s53
      %p57 = scmp.eq.s32.totalorder %s17, 0
      %p58 = por %p56, %p57
      %p59 = scmp.ne.s32.totalorder %s51, %s53
      %p60 = scmp.eq.s32.totalorder %s22, 1
      %p61 = por %p59, %p60
      %p62 = scmp.ne.s32.totalorder %s53, %s54
      %p63 = scmp.eq.s32.totalorder %s22, 0
      %p64 = por %p62, %p63
      %p65 = scmp.ne.s32.totalorder %s53, %s54
      %p66 = scmp.eq.s32.totalorder %s23, 1
      %p67 = por %p65, %p66
      %p69 = scmp.ne.s32.totalorder %s54, %s68
      %p70 = scmp.eq.s32.totalorder %s23, 0
      %p71 = por %p69, %p70
      %s73 = sadd.s32 %s72, 1
      %p76 = scmp.eq.s32.totalorder %s17, 1
      %p77 = scmp.ne.s32.totalorder %s72, %s74
      %p78 = scmp.eq.s32.totalorder %s17, 0
      %p79 = por %p77, %p78
      %p80 = scmp.ne.s32.totalorder %s72, %s74
      %p81 = scmp.eq.s32.totalorder %s22, 1
      %p82 = por %p80, %p81
      %p83 = scmp.ne.s32.totalorder %s74, %s75
      %p84 = scmp.eq.s32.totalorder %s22, 0
      %p85 = por %p83, %p84
      %p86 = scmp.ne.s32.totalorder %s74, %s75
      %p87 = scmp.eq.s32.totalorder %s23, 1
      %p88 = por %p86, %p87
      %p90 = scmp.ne.s32.totalorder %s75, %s89
      %p91 = scmp.eq.s32.totalorder %s23, 0
      %p92 = por %p90, %p91
      %s94 = sadd.s32 %s93, 1
      %p97 = scmp.eq.s32.totalorder %s17, 1
      %p98 = scmp.ne.s32.totalorder %s93, %s95
      %p99 = scmp.eq.s32.totalorder %s17, 0
      %p100 = por %p98, %p99
      %p101 = scmp.ne.s32.totalorder %s93, %s95
      %p102 = scmp.eq.s32.totalorder %s22, 1
      %p103 = por %p101, %p102
      %p104 = scmp.ne.s32.totalorder %s95, %s96
      %p105 = scmp.eq.s32.totalorder %s22, 0
      %p106 = por %p104, %p105
      %p107 = scmp.ne.s32.totalorder %s95, %s96
      %p108 = scmp.eq.s32.totalorder %s23, 1
      %p109 = por %p107, %p108
      %p111 = scmp.ne.s32.totalorder %s96, %s110
      %p112 = scmp.eq.s32.totalorder %s23, 0
      %p113 = por %p111, %p112
      %s114 = ssub.s32 %s17, %s24
      %p115 = scmp.eq.s32.totalorder %s114, 0
      %s117 = sadd.s32 %s116, 1
      %s118 = scalar_select %p115, %s116, %s117
      %p121 = pneg %p115
      %p122 = scmp.eq.s32.totalorder %s17, 1
      %p123 = por %p121, %p122
      %p124 = scmp.ne.s32.totalorder %s116, %s119
      %p125 = scmp.eq.s32.totalorder %s17, 0
      %p126 = por %p124, %p125
      %p127 = scmp.ne.s32.totalorder %s116, %s119
      %p128 = scmp.eq.s32.totalorder %s22, 1
      %p129 = por %p127, %p128
      %p130 = scmp.ne.s32.totalorder %s119, %s120
      %p131 = scmp.eq.s32.totalorder %s22, 0
      %p132 = por %p130, %p131
      %p133 = scmp.ne.s32.totalorder %s119, %s120
      %p134 = scmp.eq.s32.totalorder %s23, 1
      %p135 = por %p133, %p134
      %p137 = scmp.ne.s32.totalorder %s120, %s136
      %p138 = scmp.eq.s32.totalorder %s23, 0
      %p139 = por %p137, %p138
      %p140 = scmp.le.s32.totalorder 1, %s17
      %p141 = scmp.lt.s32.totalorder %s17, 3
      %p142 = pnand %p140, %p141
      %p143 = pneg %p142
      // Predicated region
      $region9: #{tpu_custom_call.1} parent=5 // pred_check
        _
      $region10: #{tpu_custom_call.1} parent=5 // pred_check_branch
        %145 = sbr.rel (%p142) target = $region12
      $region11: #{tpu_custom_call.1} parent=5 // pred_region
        %s146 = ssub.s32 %s17, 1
        // Predicated region
        $region13: #{tpu_custom_call.1} parent=11 // pred_check
          %p147 = pneg %p64
        $region14: #{tpu_custom_call.1} parent=11 // pred_check_branch
          %149 = sbr.rel (%p147) target = $region16
        $region15: #{tpu_custom_call.1} parent=11 // pred_region
          %s151 = ssub.s32 3072, 3072
          %152 = vsyncadd [#allocation6], %s151
          %s153 = sshll.u32 [#allocation5], 4
          %s154 = int_to_ptr.vmem [resolvable:$true] %s153
          %159 = dma.hbm_to_vmem [thread:$0]  %s1, 3072, %s154, [#allocation6], 192, 192, 12
        $region16: #{tpu_custom_call.1} parent=11 // pred_fallthru
          _
        // Predicated region
        $region17: #{tpu_custom_call.1} parent=11 // pred_check
          %p160 = pneg %p85
        $region18: #{tpu_custom_call.1} parent=11 // pred_check_branch
          %162 = sbr.rel (%p160) target = $region20
        $region19: #{tpu_custom_call.1} parent=11 // pred_region
          _
        $region20: #{tpu_custom_call.1} parent=11 // pred_fallthru
          _
        // Predicated region
        $region21: #{tpu_custom_call.1} parent=11 // pred_check
          %p163 = pneg %p106
        $region22: #{tpu_custom_call.1} parent=11 // pred_check_branch
          %165 = sbr.rel (%p163) target = $region24
        $region23: #{tpu_custom_call.1} parent=11 // pred_region
          %s167 = ssub.s32 48, 48
          %168 = vsyncadd [#allocation6], %s167
          %s170 = sshll.u32 [#allocation7], 4
          %s171 = int_to_ptr.vmem [resolvable:$true] %s170
          %173 = dma.hbm_to_vmem [thread:$0]  %s3, 48, %s171, [#allocation6]
        $region24: #{tpu_custom_call.1} parent=11 // pred_fallthru
          _
      $region12: #{tpu_custom_call.1} parent=5 // pred_fallthru
        _
      %p174 = scmp.lt.s32.totalorder %s17, 2
      // Predicated region
      $region25: #{tpu_custom_call.1} parent=5 // pred_check
        %p175 = pneg %p174
      $region26: #{tpu_custom_call.1} parent=5 // pred_check_branch
        %177 = sbr.rel (%p175) target = $region28
      $region27: #{tpu_custom_call.1} parent=5 // pred_region
        // Predicated region
        $region29: #{tpu_custom_call.1} parent=27 // pred_check
          %p178 = pneg %p37
        $region30: #{tpu_custom_call.1} parent=27 // pred_check_branch
          %180 = sbr.rel (%p178) target = $region32
        $region31: #{tpu_custom_call.1} parent=27 // pred_region
          %s181 = sand.u32 %s27, 1
          %s182 = scalar_lea.sflag [#allocation3], %s181
          %s183 = sand.u32 %s27, 1
          %s184 = smul.addr %s183, 128
          %s185 = scalar_lea.vmem [#allocation2], %s184
          %s186 = smul.u32 32, %s17
          %s188 = ssub.s32 2048, 2048
          %189 = vsyncadd %s182, %s188
          %s190 = smul.addr %s186, 64
          %s191 = scalar_lea.hbm %s0, %s190
          %s192 = sshll.u32 %s185, 4
          %s193 = int_to_ptr.vmem [resolvable:$true] %s192
          %198 = dma.hbm_to_vmem [thread:$0]  %s191, 2048, %s193, %s182, 64, 64, 4
        $region32: #{tpu_custom_call.1} parent=27 // pred_fallthru
          _
      $region28: #{tpu_custom_call.1} parent=5 // pred_fallthru
        _
      %p199 = scmp.le.s32.totalorder 1, %s17
      %p200 = scmp.lt.s32.totalorder %s17, 3
      %p201 = pnand %p199, %p200
      %p202 = pneg %p201
      // Predicated region
      $region33: #{tpu_custom_call.1} parent=5 // pred_check
        _
      $region34: #{tpu_custom_call.1} parent=5 // pred_check_branch
        %204 = sbr.rel (%p201) target = $region36
      $region35: #{tpu_custom_call.1} parent=5 // pred_region
        %s205 = ssub.s32 %s17, 1
        %s206 = sand.u32 %s30, 1
        %s207 = scalar_lea.sflag [#allocation3], %s206
        %s208 = sand.u32 %s30, 1
        %s209 = smul.addr %s208, 128
        %s210 = scalar_lea.vmem [#allocation2], %s209
        // Predicated region
        $region37: #{tpu_custom_call.1} parent=35 // pred_check
          %p211 = pneg %p43
        $region38: #{tpu_custom_call.1} parent=35 // pred_check_branch
          %213 = sbr.rel (%p211) target = $region40
        $region39: #{tpu_custom_call.1} parent=35 // pred_region
          %214 = dma.done %s207, 2048
        $region40: #{tpu_custom_call.1} parent=35 // pred_fallthru
          _
        // Predicated region
        $region41: #{tpu_custom_call.1} parent=35 // pred_check
          %p215 = pneg %p64
        $region42: #{tpu_custom_call.1} parent=35 // pred_check_branch
          %217 = sbr.rel (%p215) target = $region44
        $region43: #{tpu_custom_call.1} parent=35 // pred_region
          %218 = dma.done [#allocation6], 3072
        $region44: #{tpu_custom_call.1} parent=35 // pred_fallthru
          _
        // Predicated region
        $region45: #{tpu_custom_call.1} parent=35 // pred_check
          %p219 = pneg %p106
        $region46: #{tpu_custom_call.1} parent=35 // pred_check_branch
          %221 = sbr.rel (%p219) target = $region48
        $region47: #{tpu_custom_call.1} parent=35 // pred_region
          %222 = dma.done [#allocation6], 48
        $region48: #{tpu_custom_call.1} parent=35 // pred_fallthru
          _
        %s223 = sand.u32 %s30, 1
        %s224 = scalar_lea.sflag [#allocation3], %s223
        %s225 = sand.u32 %s30, 1
        %s226 = smul.addr %s225, 128
        %s227 = scalar_lea.vmem [#allocation2], %s226
        %p228 = pneg %p43
        %p229 = pneg %p40
        %p230 = pneg %p64
        %p231 = pneg %p61
        %p232 = pneg %p85
        %p233 = pneg %p82
        %p234 = pneg %p106
        %p235 = pneg %p103
        %p236 = pneg %p132
        %p237 = pneg %p129
        %s238 = sand.u32 %s119, 1
        %s239 = scalar_lea.sflag [#allocation4], %s238
        %s240 = sand.u32 %s119, 1
        %s241 = smul.addr %s240, 768
        %s242 = scalar_lea.vmem [#allocation8], %s241
        %s243 = smul.u32 32, %s22
        %s244 = smul.u32 32, %s22
        %v246 = vld [vmem:[%s210] sm:$0xf]
        %v247 = vld [vmem:[%s210 + $0x4] sm:$0xf]
        %v248 = vld [vmem:[%s210 + $0x8] sm:$0xf]
        %v249 = vld [vmem:[%s210 + $0xc] sm:$0xf]
        %v250 = vld [vmem:[%s210 + $0x10] sm:$0xf]
        %v251 = vld [vmem:[%s210 + $0x14] sm:$0xf]
        %v252 = vld [vmem:[%s210 + $0x18] sm:$0xf]
        %v253 = vld [vmem:[%s210 + $0x1c] sm:$0xf]
        %v254 = vld [vmem:[%s210 + $0x20] sm:$0xf]
        %v255 = vld [vmem:[%s210 + $0x24] sm:$0xf]
        %v256 = vld [vmem:[%s210 + $0x28] sm:$0xf]
        %v257 = vld [vmem:[%s210 + $0x2c] sm:$0xf]
        %v258 = vld [vmem:[%s210 + $0x30] sm:$0xf]
        %v259 = vld [vmem:[%s210 + $0x34] sm:$0xf]
        %v260 = vld [vmem:[%s210 + $0x38] sm:$0xf]
        %v261 = vld [vmem:[%s210 + $0x3c] sm:$0xf]
        %v262 = vld [vmem:[%s210 + $0x40] sm:$0xf]
        %v263 = vld [vmem:[%s210 + $0x44] sm:$0xf]
        %v264 = vld [vmem:[%s210 + $0x48] sm:$0xf]
        %v265 = vld [vmem:[%s210 + $0x4c] sm:$0xf]
        %v266 = vld [vmem:[%s210 + $0x50] sm:$0xf]
        %v267 = vld [vmem:[%s210 + $0x54] sm:$0xf]
        %v268 = vld [vmem:[%s210 + $0x58] sm:$0xf]
        %v269 = vld [vmem:[%s210 + $0x5c] sm:$0xf]
        %v270 = vld [vmem:[%s210 + $0x60] sm:$0xf]
        %v271 = vld [vmem:[%s210 + $0x64] sm:$0xf]
        %v272 = vld [vmem:[%s210 + $0x68] sm:$0xf]
        %v273 = vld [vmem:[%s210 + $0x6c] sm:$0xf]
        %v274 = vld [vmem:[%s210 + $0x70] sm:$0xf]
        %v275 = vld [vmem:[%s210 + $0x74] sm:$0xf]
        %v276 = vld [vmem:[%s210 + $0x78] sm:$0xf]
        %v277 = vld [vmem:[%s210 + $0x7c] sm:$0xf]
        %v278 = vld [vmem:[#allocation5] sm:$0xff]
        %v279 = vld [vmem:[#allocation5 + $0x8] sm:$0xf]
        %v280 = vld [vmem:[#allocation5 + $0xc] sm:$0xff]
        %v281 = vld [vmem:[#allocation5 + $0x14] sm:$0xf]
        %v282 = vld [vmem:[#allocation5 + $0x18] sm:$0xff]
        %v283 = vld [vmem:[#allocation5 + $0x20] sm:$0xf]
        %v284 = vld [vmem:[#allocation5 + $0x24] sm:$0xff]
        %v285 = vld [vmem:[#allocation5 + $0x2c] sm:$0xf]
        %v286 = vld [vmem:[#allocation5 + $0x30] sm:$0xff]
        %v287 = vld [vmem:[#allocation5 + $0x38] sm:$0xf]
        %v288 = vld [vmem:[#allocation5 + $0x3c] sm:$0xff]
        %v289 = vld [vmem:[#allocation5 + $0x44] sm:$0xf]
        %v290 = vld [vmem:[#allocation5 + $0x48] sm:$0xff]
        %v291 = vld [vmem:[#allocation5 + $0x50] sm:$0xf]
        %v292 = vld [vmem:[#allocation5 + $0x54] sm:$0xff]
        %v293 = vld [vmem:[#allocation5 + $0x5c] sm:$0xf]
        %v294 = vld [vmem:[#allocation5 + $0x60] sm:$0xff]
        %v295 = vld [vmem:[#allocation5 + $0x68] sm:$0xf]
        %v296 = vld [vmem:[#allocation5 + $0x6c] sm:$0xff]
        %v297 = vld [vmem:[#allocation5 + $0x74] sm:$0xf]
        %v298 = vld [vmem:[#allocation5 + $0x78] sm:$0xff]
        %v299 = vld [vmem:[#allocation5 + $0x80] sm:$0xf]
        %v300 = vld [vmem:[#allocation5 + $0x84] sm:$0xff]
        %v301 = vld [vmem:[#allocation5 + $0x8c] sm:$0xf]
        %v302 = vld [vmem:[#allocation5 + $0x90] sm:$0xff]
        %v303 = vld [vmem:[#allocation5 + $0x98] sm:$0xf]
        %v304 = vld [vmem:[#allocation5 + $0x9c] sm:$0xff]
        %v305 = vld [vmem:[#allocation5 + $0xa4] sm:$0xf]
        %v306 = vld [vmem:[#allocation5 + $0xa8] sm:$0xff]
        %v307 = vld [vmem:[#allocation5 + $0xb0] sm:$0xf]
        %v308 = vld [vmem:[#allocation5 + $0xb4] sm:$0xff]
        %v309 = vld [vmem:[#allocation5 + $0xbc] sm:$0xf]
        %v342 = vunpack.c.l.b16 %v246
        %v343 = vunpack.c.l.b16 %v247
        %v344 = vunpack.c.l.b16 %v248
        %v345 = vunpack.c.l.b16 %v249
        %v346 = vunpack.c.l.b16 %v250
        %v347 = vunpack.c.l.b16 %v251
        %v348 = vunpack.c.l.b16 %v252
        %v349 = vunpack.c.l.b16 %v253
        %v350 = vunpack.c.l.b16 %v254
        %v351 = vunpack.c.l.b16 %v255
        %v352 = vunpack.c.l.b16 %v256
        %v353 = vunpack.c.l.b16 %v257
        %v354 = vunpack.c.l.b16 %v258
        %v355 = vunpack.c.l.b16 %v259
        %v356 = vunpack.c.l.b16 %v260
        %v357 = vunpack.c.l.b16 %v261
        %v358 = vunpack.c.l.b16 %v262
        %v359 = vunpack.c.l.b16 %v263
        %v360 = vunpack.c.l.b16 %v264
        %v361 = vunpack.c.l.b16 %v265
        %v362 = vunpack.c.l.b16 %v266
        %v363 = vunpack.c.l.b16 %v267
        %v364 = vunpack.c.l.b16 %v268
        %v365 = vunpack.c.l.b16 %v269
        %v366 = vunpack.c.l.b16 %v270
        %v367 = vunpack.c.l.b16 %v271
        %v368 = vunpack.c.l.b16 %v272
        %v369 = vunpack.c.l.b16 %v273
        %v370 = vunpack.c.l.b16 %v274
        %v371 = vunpack.c.l.b16 %v275
        %v372 = vunpack.c.l.b16 %v276
        %v373 = vunpack.c.l.b16 %v277
        %v374 = vpack.c.b16 %v343, %v342
        %v375 = vpack.c.b16 %v345, %v344
        %v376 = vpack.c.b16 %v347, %v346
        %v377 = vpack.c.b16 %v349, %v348
        %v378 = vpack.c.b16 %v351, %v350
        %v379 = vpack.c.b16 %v353, %v352
        %v380 = vpack.c.b16 %v355, %v354
        %v381 = vpack.c.b16 %v357, %v356
        %v382 = vpack.c.b16 %v359, %v358
        %v383 = vpack.c.b16 %v361, %v360
        %v384 = vpack.c.b16 %v363, %v362
        %v385 = vpack.c.b16 %v365, %v364
        %v386 = vpack.c.b16 %v367, %v366
        %v387 = vpack.c.b16 %v369, %v368
        %v388 = vpack.c.b16 %v371, %v370
        %v389 = vpack.c.b16 %v373, %v372
        %v438 = vunpack.c.l.b16 %v278
        %v439 = vunpack.c.h.b16 %v278
        %v440 = vunpack.c.l.b16 %v279
        %v441 = vunpack.c.l.b16 %v280
        %v442 = vunpack.c.h.b16 %v280
        %v443 = vunpack.c.l.b16 %v281
        %v444 = vunpack.c.l.b16 %v282
        %v445 = vunpack.c.h.b16 %v282
        %v446 = vunpack.c.l.b16 %v283
        %v447 = vunpack.c.l.b16 %v284
        %v448 = vunpack.c.h.b16 %v284
        %v449 = vunpack.c.l.b16 %v285
        %v450 = vunpack.c.l.b16 %v286
        %v451 = vunpack.c.h.b16 %v286
        %v452 = vunpack.c.l.b16 %v287
        %v453 = vunpack.c.l.b16 %v288
        %v454 = vunpack.c.h.b16 %v288
        %v455 = vunpack.c.l.b16 %v289
        %v456 = vunpack.c.l.b16 %v290
        %v457 = vunpack.c.h.b16 %v290
        %v458 = vunpack.c.l.b16 %v291
        %v459 = vunpack.c.l.b16 %v292
        %v460 = vunpack.c.h.b16 %v292
        %v461 = vunpack.c.l.b16 %v293
        %v462 = vunpack.c.l.b16 %v294
        %v463 = vunpack.c.h.b16 %v294
        %v464 = vunpack.c.l.b16 %v295
        %v465 = vunpack.c.l.b16 %v296
        %v466 = vunpack.c.h.b16 %v296
        %v467 = vunpack.c.l.b16 %v297
        %v468 = vunpack.c.l.b16 %v298
        %v469 = vunpack.c.h.b16 %v298
        %v470 = vunpack.c.l.b16 %v299
        %v471 = vunpack.c.l.b16 %v300
        %v472 = vunpack.c.h.b16 %v300
        %v473 = vunpack.c.l.b16 %v301
        %v474 = vunpack.c.l.b16 %v302
        %v475 = vunpack.c.h.b16 %v302
        %v476 = vunpack.c.l.b16 %v303
        %v477 = vunpack.c.l.b16 %v304
        %v478 = vunpack.c.h.b16 %v304
        %v479 = vunpack.c.l.b16 %v305
        %v480 = vunpack.c.l.b16 %v306
        %v481 = vunpack.c.h.b16 %v306
        %v482 = vunpack.c.l.b16 %v307
        %v483 = vunpack.c.l.b16 %v308
        %v484 = vunpack.c.h.b16 %v308
        %v485 = vunpack.c.l.b16 %v309
        %v486 = vpack.c.b16 %v441, %v438
        %v487 = vpack.c.b16 %v442, %v439
        %v488 = vpack.c.b16 %v443, %v440
        %v489 = vpack.c.b16 %v447, %v444
        %v490 = vpack.c.b16 %v448, %v445
        %v491 = vpack.c.b16 %v449, %v446
        %v492 = vpack.c.b16 %v453, %v450
        %v493 = vpack.c.b16 %v454, %v451
        %v494 = vpack.c.b16 %v455, %v452
        %v495 = vpack.c.b16 %v459, %v456
        %v496 = vpack.c.b16 %v460, %v457
        %v497 = vpack.c.b16 %v461, %v458
        %v498 = vpack.c.b16 %v465, %v462
        %v499 = vpack.c.b16 %v466, %v463
        %v500 = vpack.c.b16 %v467, %v464
        %v501 = vpack.c.b16 %v471, %v468
        %v502 = vpack.c.b16 %v472, %v469
        %v503 = vpack.c.b16 %v473, %v470
        %v504 = vpack.c.b16 %v477, %v474
        %v505 = vpack.c.b16 %v478, %v475
        %v506 = vpack.c.b16 %v479, %v476
        %v507 = vpack.c.b16 %v483, %v480
        %v508 = vpack.c.b16 %v484, %v481
        %v509 = vpack.c.b16 %v485, %v482
        %534 = vmatprep.subr.bf16.mxu0 %v508
        %535 = vmatpush1.bf16.msra.mxu0 %v507
        %536 = vmatprep.subr.bf16.mxu0 %v505
        %537 = vmatpush1.bf16.msra.mxu0 %v504
        %538 = vmatprep.subr.bf16.mxu0 %v502
        %539 = vmatpush1.bf16.msra.mxu0 %v501
        %540 = vmatprep.subr.bf16.mxu0 %v499
        %541 = vmatpush1.bf16.msra.mxu0 %v498
        %542 = vmatprep.subr.bf16.mxu0 %v496
        %543 = vmatpush1.bf16.msra.mxu0 %v495
        %544 = vmatprep.subr.bf16.mxu0 %v493
        %545 = vmatpush1.bf16.msra.mxu0 %v492
        %546 = vmatprep.subr.bf16.mxu0 %v490
        %547 = vmatpush1.bf16.msra.mxu0 %v489
        %548 = vmatprep.subr.bf16.mxu0 %v487
        %549 = vmatpush1.bf16.msra.mxu0 %v486
        %550 = vmatprep.subr.bf16.mxu0 0
        %551 = vmatpush2.bf16.msra.mxu0 0
        %552 = vmatprep.subr.bf16.mxu0 0
        %553 = vmatpush2.bf16.msra.mxu0 0
        %554 = vmatprep.subr.bf16.mxu0 0
        %555 = vmatpush2.bf16.msra.mxu0 0
        %556 = vmatprep.subr.bf16.mxu0 0
        %557 = vmatpush2.bf16.msra.mxu0 0
        %558 = vmatprep.subr.bf16.mxu0 0
        %559 = vmatpush2.bf16.msra.mxu0 0
        %560 = vmatprep.subr.bf16.mxu0 0
        %561 = vmatpush2.bf16.msra.mxu0 0
        %562 = vmatprep.subr.bf16.mxu0 0
        %563 = vmatpush2.bf16.msra.mxu0 0
        %564 = vmatprep.subr.bf16.mxu0 0
        %565 = vmatpush2.bf16.msra.mxu0 0
        %566 = vmatprep.mubr.bf16.mxu0 0
        %567 = vmatmul.mubr.bf16.gmra.mxu0 %v374
        %v568 = vpop.f32.mrf.mxu0
        %v569 = vadd.f32 0.0, %v568
        %v570 = vpop.f32.mrf.mxu0
        %v571 = vadd.f32 0.0, %v570
        %v572 = vpop.f32.mrf.mxu0
        %v573 = vadd.f32 0.0, %v572
        %v574 = vpop.f32.mrf.mxu0
        %v575 = vadd.f32 0.0, %v574
        %576 = vmatprep.mubr.bf16.mxu0 0
        %577 = vmatmul.mubr.bf16.gmra.mxu0 %v375
        %v578 = vpop.f32.mrf.mxu0
        %v579 = vadd.f32 0.0, %v578
        %v580 = vpop.f32.mrf.mxu0
        %v581 = vadd.f32 0.0, %v580
        %v582 = vpop.f32.mrf.mxu0
        %v583 = vadd.f32 0.0, %v582
        %v584 = vpop.f32.mrf.mxu0
        %v585 = vadd.f32 0.0, %v584
        %586 = vmatprep.mubr.bf16.mxu0 0
        %587 = vmatmul.mubr.bf16.gmra.mxu0 %v376
        %v588 = vpop.f32.mrf.mxu0
        %v589 = vadd.f32 0.0, %v588
        %v590 = vpop.f32.mrf.mxu0
        %v591 = vadd.f32 0.0, %v590
        %v592 = vpop.f32.mrf.mxu0
        %v593 = vadd.f32 0.0, %v592
        %v594 = vpop.f32.mrf.mxu0
        %v595 = vadd.f32 0.0, %v594
        %596 = vmatprep.mubr.bf16.mxu0 0
        %597 = vmatmul.mubr.bf16.gmra.mxu0 %v377
        %v598 = vpop.f32.mrf.mxu0
        %v599 = vadd.f32 0.0, %v598
        %v600 = vpop.f32.mrf.mxu0
        %v601 = vadd.f32 0.0, %v600
        %v602 = vpop.f32.mrf.mxu0
        %v603 = vadd.f32 0.0, %v602
        %v604 = vpop.f32.mrf.mxu0
        %v605 = vadd.f32 0.0, %v604
        %606 = vmatprep.mubr.bf16.mxu0 0
        %607 = vmatmul.mubr.bf16.gmra.mxu0 %v378
        %v608 = vpop.f32.mrf.mxu0
        %v609 = vadd.f32 0.0, %v608
        %v610 = vpop.f32.mrf.mxu0
        %v611 = vadd.f32 0.0, %v610
        %v612 = vpop.f32.mrf.mxu0
        %v613 = vadd.f32 0.0, %v612
        %v614 = vpop.f32.mrf.mxu0
        %v615 = vadd.f32 0.0, %v614
        %616 = vmatprep.mubr.bf16.mxu0 0
        %617 = vmatmul.mubr.bf16.gmra.mxu0 %v379
        %v618 = vpop.f32.mrf.mxu0
        %v619 = vadd.f32 0.0, %v618
        %v620 = vpop.f32.mrf.mxu0
        %v621 = vadd.f32 0.0, %v620
        %v622 = vpop.f32.mrf.mxu0
        %v623 = vadd.f32 0.0, %v622
        %v624 = vpop.f32.mrf.mxu0
        %v625 = vadd.f32 0.0, %v624
        %626 = vmatprep.mubr.bf16.mxu0 0
        %627 = vmatmul.mubr.bf16.gmra.mxu0 %v380
        %v628 = vpop.f32.mrf.mxu0
        %v629 = vadd.f32 0.0, %v628
        %v630 = vpop.f32.mrf.mxu0
        %v631 = vadd.f32 0.0, %v630
        %v632 = vpop.f32.mrf.mxu0
        %v633 = vadd.f32 0.0, %v632
        %v634 = vpop.f32.mrf.mxu0
        %v635 = vadd.f32 0.0, %v634
        %636 = vmatprep.mubr.bf16.mxu0 0
        %637 = vmatmul.mubr.bf16.gmra.mxu0 %v381
        %v638 = vpop.f32.mrf.mxu0
        %v639 = vadd.f32 0.0, %v638
        %v640 = vpop.f32.mrf.mxu0
        %v641 = vadd.f32 0.0, %v640
        %v642 = vpop.f32.mrf.mxu0
        %v643 = vadd.f32 0.0, %v642
        %v644 = vpop.f32.mrf.mxu0
        %v645 = vadd.f32 0.0, %v644
        %646 = vmatprep.mubr.bf16.mxu0 0
        %647 = vmatmul.mubr.bf16.gmra.mxu0 %v382
        %v648 = vpop.f32.mrf.mxu0
        %v649 = vadd.f32 0.0, %v648
        %v650 = vpop.f32.mrf.mxu0
        %v651 = vadd.f32 0.0, %v650
        %v652 = vpop.f32.mrf.mxu0
        %v653 = vadd.f32 0.0, %v652
        %v654 = vpop.f32.mrf.mxu0
        %v655 = vadd.f32 0.0, %v654
        %656 = vmatprep.mubr.bf16.mxu0 0
        %657 = vmatmul.mubr.bf16.gmra.mxu0 %v383
        %v658 = vpop.f32.mrf.mxu0
        %v659 = vadd.f32 0.0, %v658
        %v660 = vpop.f32.mrf.mxu0
        %v661 = vadd.f32 0.0, %v660
        %v662 = vpop.f32.mrf.mxu0
        %v663 = vadd.f32 0.0, %v662
        %v664 = vpop.f32.mrf.mxu0
        %v665 = vadd.f32 0.0, %v664
        %666 = vmatprep.mubr.bf16.mxu0 0
        %667 = vmatmul.mubr.bf16.gmra.mxu0 %v384
        %v668 = vpop.f32.mrf.mxu0
        %v669 = vadd.f32 0.0, %v668
        %v670 = vpop.f32.mrf.mxu0
        %v671 = vadd.f32 0.0, %v670
        %v672 = vpop.f32.mrf.mxu0
        %v673 = vadd.f32 0.0, %v672
        %v674 = vpop.f32.mrf.mxu0
        %v675 = vadd.f32 0.0, %v674
        %676 = vmatprep.mubr.bf16.mxu0 0
        %677 = vmatmul.mubr.bf16.gmra.mxu0 %v385
        %v678 = vpop.f32.mrf.mxu0
        %v679 = vadd.f32 0.0, %v678
        %v680 = vpop.f32.mrf.mxu0
        %v681 = vadd.f32 0.0, %v680
        %v682 = vpop.f32.mrf.mxu0
        %v683 = vadd.f32 0.0, %v682
        %v684 = vpop.f32.mrf.mxu0
        %v685 = vadd.f32 0.0, %v684
        %686 = vmatprep.mubr.bf16.mxu0 0
        %687 = vmatmul.mubr.bf16.gmra.mxu0 %v386
        %v688 = vpop.f32.mrf.mxu0
        %v689 = vadd.f32 0.0, %v688
        %v690 = vpop.f32.mrf.mxu0
        %v691 = vadd.f32 0.0, %v690
        %v692 = vpop.f32.mrf.mxu0
        %v693 = vadd.f32 0.0, %v692
        %v694 = vpop.f32.mrf.mxu0
        %v695 = vadd.f32 0.0, %v694
        %696 = vmatprep.mubr.bf16.mxu0 0
        %697 = vmatmul.mubr.bf16.gmra.mxu0 %v387
        %v698 = vpop.f32.mrf.mxu0
        %v699 = vadd.f32 0.0, %v698
        %v700 = vpop.f32.mrf.mxu0
        %v701 = vadd.f32 0.0, %v700
        %v702 = vpop.f32.mrf.mxu0
        %v703 = vadd.f32 0.0, %v702
        %v704 = vpop.f32.mrf.mxu0
        %v705 = vadd.f32 0.0, %v704
        %706 = vmatprep.mubr.bf16.mxu0 0
        %707 = vmatmul.mubr.bf16.gmra.mxu0 %v388
        %v708 = vpop.f32.mrf.mxu0
        %v709 = vadd.f32 0.0, %v708
        %v710 = vpop.f32.mrf.mxu0
        %v711 = vadd.f32 0.0, %v710
        %v712 = vpop.f32.mrf.mxu0
        %v713 = vadd.f32 0.0, %v712
        %v714 = vpop.f32.mrf.mxu0
        %v715 = vadd.f32 0.0, %v714
        %716 = vmatprep.mubr.bf16.mxu0 0
        %717 = vmatmul.mubr.bf16.gmra.mxu0 %v389
        %v718 = vpop.f32.mrf.mxu0
        %v719 = vadd.f32 0.0, %v718
        %v720 = vpop.f32.mrf.mxu0
        %v721 = vadd.f32 0.0, %v720
        %v722 = vpop.f32.mrf.mxu0
        %v723 = vadd.f32 0.0, %v722
        %v724 = vpop.f32.mrf.mxu0
        %v725 = vadd.f32 0.0, %v724
        %726 = vdwg.mxu0
        %727 = vmatprep.subr.bf16.mxu0 0
        %728 = vmatpush1.bf16.msra.mxu0 %v509
        %729 = vmatprep.subr.bf16.mxu0 0
        %730 = vmatpush1.bf16.msra.mxu0 %v506
        %731 = vmatprep.subr.bf16.mxu0 0
        %732 = vmatpush1.bf16.msra.mxu0 %v503
        %733 = vmatprep.subr.bf16.mxu0 0
        %734 = vmatpush1.bf16.msra.mxu0 %v500
        %735 = vmatprep.subr.bf16.mxu0 0
        %736 = vmatpush1.bf16.msra.mxu0 %v497
        %737 = vmatprep.subr.bf16.mxu0 0
        %738 = vmatpush1.bf16.msra.mxu0 %v494
        %739 = vmatprep.subr.bf16.mxu0 0
        %740 = vmatpush1.bf16.msra.mxu0 %v491
        %741 = vmatprep.subr.bf16.mxu0 0
        %742 = vmatpush1.bf16.msra.mxu0 %v488
        %743 = vmatprep.subr.bf16.mxu0 0
        %744 = vmatpush2.bf16.msra.mxu0 0
        %745 = vmatprep.subr.bf16.mxu0 0
        %746 = vmatpush2.bf16.msra.mxu0 0
        %747 = vmatprep.subr.bf16.mxu0 0
        %748 = vmatpush2.bf16.msra.mxu0 0
        %749 = vmatprep.subr.bf16.mxu0 0
        %750 = vmatpush2.bf16.msra.mxu0 0
        %751 = vmatprep.subr.bf16.mxu0 0
        %752 = vmatpush2.bf16.msra.mxu0 0
        %753 = vmatprep.subr.bf16.mxu0 0
        %754 = vmatpush2.bf16.msra.mxu0 0
        %755 = vmatprep.subr.bf16.mxu0 0
        %756 = vmatpush2.bf16.msra.mxu0 0
        %757 = vmatprep.subr.bf16.mxu0 0
        %758 = vmatpush2.bf16.msra.mxu0 0
        %759 = vmatprep.mubr.bf16.mxu0 0
        %760 = vmatmul.mubr.bf16.gmra.mxu0 %v374
        %v761 = vpop.f32.mrf.mxu0
        %v762 = vadd.f32 0.0, %v761
        %v763 = vpop.f32.mrf.mxu0
        %v764 = vpop.f32.mrf.mxu0
        %v765 = vadd.f32 0.0, %v764
        %v766 = vpop.f32.mrf.mxu0
        %767 = vmatprep.mubr.bf16.mxu0 0
        %768 = vmatmul.mubr.bf16.gmra.mxu0 %v375
        %v769 = vpop.f32.mrf.mxu0
        %v770 = vadd.f32 0.0, %v769
        %v771 = vpop.f32.mrf.mxu0
        %v772 = vpop.f32.mrf.mxu0
        %v773 = vadd.f32 0.0, %v772
        %v774 = vpop.f32.mrf.mxu0
        %775 = vmatprep.mubr.bf16.mxu0 0
        %776 = vmatmul.mubr.bf16.gmra.mxu0 %v376
        %v777 = vpop.f32.mrf.mxu0
        %v778 = vadd.f32 0.0, %v777
        %v779 = vpop.f32.mrf.mxu0
        %v780 = vpop.f32.mrf.mxu0
        %v781 = vadd.f32 0.0, %v780
        %v782 = vpop.f32.mrf.mxu0
        %783 = vmatprep.mubr.bf16.mxu0 0
        %784 = vmatmul.mubr.bf16.gmra.mxu0 %v377
        %v785 = vpop.f32.mrf.mxu0
        %v786 = vadd.f32 0.0, %v785
        %v787 = vpop.f32.mrf.mxu0
        %v788 = vpop.f32.mrf.mxu0
        %v789 = vadd.f32 0.0, %v788
        %v790 = vpop.f32.mrf.mxu0
        %791 = vmatprep.mubr.bf16.mxu0 0
        %792 = vmatmul.mubr.bf16.gmra.mxu0 %v378
        %v793 = vpop.f32.mrf.mxu0
        %v794 = vadd.f32 0.0, %v793
        %v795 = vpop.f32.mrf.mxu0
        %v796 = vpop.f32.mrf.mxu0
        %v797 = vadd.f32 0.0, %v796
        %v798 = vpop.f32.mrf.mxu0
        %799 = vmatprep.mubr.bf16.mxu0 0
        %800 = vmatmul.mubr.bf16.gmra.mxu0 %v379
        %v801 = vpop.f32.mrf.mxu0
        %v802 = vadd.f32 0.0, %v801
        %v803 = vpop.f32.mrf.mxu0
        %v804 = vpop.f32.mrf.mxu0
        %v805 = vadd.f32 0.0, %v804
        %v806 = vpop.f32.mrf.mxu0
        %807 = vmatprep.mubr.bf16.mxu0 0
        %808 = vmatmul.mubr.bf16.gmra.mxu0 %v380
        %v809 = vpop.f32.mrf.mxu0
        %v810 = vadd.f32 0.0, %v809
        %v811 = vpop.f32.mrf.mxu0
        %v812 = vpop.f32.mrf.mxu0
        %v813 = vadd.f32 0.0, %v812
        %v814 = vpop.f32.mrf.mxu0
        %815 = vmatprep.mubr.bf16.mxu0 0
        %816 = vmatmul.mubr.bf16.gmra.mxu0 %v381
        %v817 = vpop.f32.mrf.mxu0
        %v818 = vadd.f32 0.0, %v817
        %v819 = vpop.f32.mrf.mxu0
        %v820 = vpop.f32.mrf.mxu0
        %v821 = vadd.f32 0.0, %v820
        %v822 = vpop.f32.mrf.mxu0
        %823 = vmatprep.mubr.bf16.mxu0 0
        %824 = vmatmul.mubr.bf16.gmra.mxu0 %v382
        %v825 = vpop.f32.mrf.mxu0
        %v826 = vadd.f32 0.0, %v825
        %v827 = vpop.f32.mrf.mxu0
        %v828 = vpop.f32.mrf.mxu0
        %v829 = vadd.f32 0.0, %v828
        %v830 = vpop.f32.mrf.mxu0
        %831 = vmatprep.mubr.bf16.mxu0 0
        %832 = vmatmul.mubr.bf16.gmra.mxu0 %v383
        %v833 = vpop.f32.mrf.mxu0
        %v834 = vadd.f32 0.0, %v833
        %v835 = vpop.f32.mrf.mxu0
        %v836 = vpop.f32.mrf.mxu0
        %v837 = vadd.f32 0.0, %v836
        %v838 = vpop.f32.mrf.mxu0
        %839 = vmatprep.mubr.bf16.mxu0 0
        %840 = vmatmul.mubr.bf16.gmra.mxu0 %v384
        %v841 = vpop.f32.mrf.mxu0
        %v842 = vadd.f32 0.0, %v841
        %v843 = vpop.f32.mrf.mxu0
        %v844 = vpop.f32.mrf.mxu0
        %v845 = vadd.f32 0.0, %v844
        %v846 = vpop.f32.mrf.mxu0
        %847 = vmatprep.mubr.bf16.mxu0 0
        %848 = vmatmul.mubr.bf16.gmra.mxu0 %v385
        %v849 = vpop.f32.mrf.mxu0
        %v850 = vadd.f32 0.0, %v849
        %v851 = vpop.f32.mrf.mxu0
        %v852 = vpop.f32.mrf.mxu0
        %v853 = vadd.f32 0.0, %v852
        %v854 = vpop.f32.mrf.mxu0
        %855 = vmatprep.mubr.bf16.mxu0 0
        %856 = vmatmul.mubr.bf16.gmra.mxu0 %v386
        %v857 = vpop.f32.mrf.mxu0
        %v858 = vadd.f32 0.0, %v857
        %v859 = vpop.f32.mrf.mxu0
        %v860 = vpop.f32.mrf.mxu0
        %v861 = vadd.f32 0.0, %v860
        %v862 = vpop.f32.mrf.mxu0
        %863 = vmatprep.mubr.bf16.mxu0 0
        %864 = vmatmul.mubr.bf16.gmra.mxu0 %v387
        %v865 = vpop.f32.mrf.mxu0
        %v866 = vadd.f32 0.0, %v865
        %v867 = vpop.f32.mrf.mxu0
        %v868 = vpop.f32.mrf.mxu0
        %v869 = vadd.f32 0.0, %v868
        %v870 = vpop.f32.mrf.mxu0
        %871 = vmatprep.mubr.bf16.mxu0 0
        %872 = vmatmul.mubr.bf16.gmra.mxu0 %v388
        %v873 = vpop.f32.mrf.mxu0
        %v874 = vadd.f32 0.0, %v873
        %v875 = vpop.f32.mrf.mxu0
        %v876 = vpop.f32.mrf.mxu0
        %v877 = vadd.f32 0.0, %v876
        %v878 = vpop.f32.mrf.mxu0
        %879 = vmatprep.mubr.bf16.mxu0 0
        %880 = vmatmul.mubr.bf16.gmra.mxu0 %v389
        %v881 = vpop.f32.mrf.mxu0
        %v882 = vadd.f32 0.0, %v881
        %v883 = vpop.f32.mrf.mxu0
        %v884 = vpop.f32.mrf.mxu0
        %v885 = vadd.f32 0.0, %v884
        %v886 = vpop.f32.mrf.mxu0
        %887 = vdwg.mxu0
        %v888 = vld [vmem:[%s2] sm:$0x7]
        %v890 = vlaneseq
        %v891 = vshrl.u32 %v890, 7
        %v892 = vsub.s32 0, %v891
        %v893 = vrot.slane %v888, %v892
        %v894 = vlaneseq
        %v895 = vshrl.u32 %v894, 7
        %v896 = vsub.s32 1, %v895
        %v897 = vrot.slane %v888, %v896
        %v898 = vlaneseq
        %v899 = vshrl.u32 %v898, 7
        %v900 = vsub.s32 2, %v899
        %v901 = vrot.slane %v888, %v900
        %v905 = vmul.f32 %v569, %v893
        %v906 = vmul.f32 %v571, %v897
        %v907 = vmul.f32 %v762, %v901
        %v908 = vmul.f32 %v573, %v893
        %v909 = vmul.f32 %v575, %v897
        %v910 = vmul.f32 %v765, %v901
        %v911 = vmul.f32 %v579, %v893
        %v912 = vmul.f32 %v581, %v897
        %v913 = vmul.f32 %v770, %v901
        %v914 = vmul.f32 %v583, %v893
        %v915 = vmul.f32 %v585, %v897
        %v916 = vmul.f32 %v773, %v901
        %v917 = vmul.f32 %v589, %v893
        %v918 = vmul.f32 %v591, %v897
        %v919 = vmul.f32 %v778, %v901
        %v920 = vmul.f32 %v593, %v893
        %v921 = vmul.f32 %v595, %v897
        %v922 = vmul.f32 %v781, %v901
        %v923 = vmul.f32 %v599, %v893
        %v924 = vmul.f32 %v601, %v897
        %v925 = vmul.f32 %v786, %v901
        %v926 = vmul.f32 %v603, %v893
        %v927 = vmul.f32 %v605, %v897
        %v928 = vmul.f32 %v789, %v901
        %v929 = vmul.f32 %v609, %v893
        %v930 = vmul.f32 %v611, %v897
        %v931 = vmul.f32 %v794, %v901
        %v932 = vmul.f32 %v613, %v893
        %v933 = vmul.f32 %v615, %v897
        %v934 = vmul.f32 %v797, %v901
        %v935 = vmul.f32 %v619, %v893
        %v936 = vmul.f32 %v621, %v897
        %v937 = vmul.f32 %v802, %v901
        %v938 = vmul.f32 %v623, %v893
        %v939 = vmul.f32 %v625, %v897
        %v940 = vmul.f32 %v805, %v901
        %v941 = vmul.f32 %v629, %v893
        %v942 = vmul.f32 %v631, %v897
        %v943 = vmul.f32 %v810, %v901
        %v944 = vmul.f32 %v633, %v893
        %v945 = vmul.f32 %v635, %v897
        %v946 = vmul.f32 %v813, %v901
        %v947 = vmul.f32 %v639, %v893
        %v948 = vmul.f32 %v641, %v897
        %v949 = vmul.f32 %v818, %v901
        %v950 = vmul.f32 %v643, %v893
        %v951 = vmul.f32 %v645, %v897
        %v952 = vmul.f32 %v821, %v901
        %v953 = vmul.f32 %v649, %v893
        %v954 = vmul.f32 %v651, %v897
        %v955 = vmul.f32 %v826, %v901
        %v956 = vmul.f32 %v653, %v893
        %v957 = vmul.f32 %v655, %v897
        %v958 = vmul.f32 %v829, %v901
        %v959 = vmul.f32 %v659, %v893
        %v960 = vmul.f32 %v661, %v897
        %v961 = vmul.f32 %v834, %v901
        %v962 = vmul.f32 %v663, %v893
        %v963 = vmul.f32 %v665, %v897
        %v964 = vmul.f32 %v837, %v901
        %v965 = vmul.f32 %v669, %v893
        %v966 = vmul.f32 %v671, %v897
        %v967 = vmul.f32 %v842, %v901
        %v968 = vmul.f32 %v673, %v893
        %v969 = vmul.f32 %v675, %v897
        %v970 = vmul.f32 %v845, %v901
        %v971 = vmul.f32 %v679, %v893
        %v972 = vmul.f32 %v681, %v897
        %v973 = vmul.f32 %v850, %v901
        %v974 = vmul.f32 %v683, %v893
        %v975 = vmul.f32 %v685, %v897
        %v976 = vmul.f32 %v853, %v901
        %v977 = vmul.f32 %v689, %v893
        %v978 = vmul.f32 %v691, %v897
        %v979 = vmul.f32 %v858, %v901
        %v980 = vmul.f32 %v693, %v893
        %v981 = vmul.f32 %v695, %v897
        %v982 = vmul.f32 %v861, %v901
        %v983 = vmul.f32 %v699, %v893
        %v984 = vmul.f32 %v701, %v897
        %v985 = vmul.f32 %v866, %v901
        %v986 = vmul.f32 %v703, %v893
        %v987 = vmul.f32 %v705, %v897
        %v988 = vmul.f32 %v869, %v901
        %v989 = vmul.f32 %v709, %v893
        %v990 = vmul.f32 %v711, %v897
        %v991 = vmul.f32 %v874, %v901
        %v992 = vmul.f32 %v713, %v893
        %v993 = vmul.f32 %v715, %v897
        %v994 = vmul.f32 %v877, %v901
        %v995 = vmul.f32 %v719, %v893
        %v996 = vmul.f32 %v721, %v897
        %v997 = vmul.f32 %v882, %v901
        %v998 = vmul.f32 %v723, %v893
        %v999 = vmul.f32 %v725, %v897
        %v1000 = vmul.f32 %v885, %v901
        %v1001 = vld [vmem:[#allocation7] sm:$0x7]
        %v1003 = vlaneseq
        %v1004 = vshrl.u32 %v1003, 7
        %v1005 = vsub.s32 0, %v1004
        %v1006 = vrot.slane %v1001, %v1005
        %v1007 = vlaneseq
        %v1008 = vshrl.u32 %v1007, 7
        %v1009 = vsub.s32 1, %v1008
        %v1010 = vrot.slane %v1001, %v1009
        %v1011 = vlaneseq
        %v1012 = vshrl.u32 %v1011, 7
        %v1013 = vsub.s32 2, %v1012
        %v1014 = vrot.slane %v1001, %v1013
        %v1018 = vadd.f32 %v905, %v1006
        %v1019 = vadd.f32 %v906, %v1010
        %v1020 = vadd.f32 %v907, %v1014
        %v1021 = vadd.f32 %v908, %v1006
        %v1022 = vadd.f32 %v909, %v1010
        %v1023 = vadd.f32 %v910, %v1014
        %v1024 = vadd.f32 %v911, %v1006
        %v1025 = vadd.f32 %v912, %v1010
        %v1026 = vadd.f32 %v913, %v1014
        %v1027 = vadd.f32 %v914, %v1006
        %v1028 = vadd.f32 %v915, %v1010
        %v1029 = vadd.f32 %v916, %v1014
        %v1030 = vadd.f32 %v917, %v1006
        %v1031 = vadd.f32 %v918, %v1010
        %v1032 = vadd.f32 %v919, %v1014
        %v1033 = vadd.f32 %v920, %v1006
        %v1034 = vadd.f32 %v921, %v1010
        %v1035 = vadd.f32 %v922, %v1014
        %v1036 = vadd.f32 %v923, %v1006
        %v1037 = vadd.f32 %v924, %v1010
        %v1038 = vadd.f32 %v925, %v1014
        %v1039 = vadd.f32 %v926, %v1006
        %v1040 = vadd.f32 %v927, %v1010
        %v1041 = vadd.f32 %v928, %v1014
        %v1042 = vadd.f32 %v929, %v1006
        %v1043 = vadd.f32 %v930, %v1010
        %v1044 = vadd.f32 %v931, %v1014
        %v1045 = vadd.f32 %v932, %v1006
        %v1046 = vadd.f32 %v933, %v1010
        %v1047 = vadd.f32 %v934, %v1014
        %v1048 = vadd.f32 %v935, %v1006
        %v1049 = vadd.f32 %v936, %v1010
        %v1050 = vadd.f32 %v937, %v1014
        %v1051 = vadd.f32 %v938, %v1006
        %v1052 = vadd.f32 %v939, %v1010
        %v1053 = vadd.f32 %v940, %v1014
        %v1054 = vadd.f32 %v941, %v1006
        %v1055 = vadd.f32 %v942, %v1010
        %v1056 = vadd.f32 %v943, %v1014
        %v1057 = vadd.f32 %v944, %v1006
        %v1058 = vadd.f32 %v945, %v1010
        %v1059 = vadd.f32 %v946, %v1014
        %v1060 = vadd.f32 %v947, %v1006
        %v1061 = vadd.f32 %v948, %v1010
        %v1062 = vadd.f32 %v949, %v1014
        %v1063 = vadd.f32 %v950, %v1006
        %v1064 = vadd.f32 %v951, %v1010
        %v1065 = vadd.f32 %v952, %v1014
        %v1066 = vadd.f32 %v953, %v1006
        %v1067 = vadd.f32 %v954, %v1010
        %v1068 = vadd.f32 %v955, %v1014
        %v1069 = vadd.f32 %v956, %v1006
        %v1070 = vadd.f32 %v957, %v1010
        %v1071 = vadd.f32 %v958, %v1014
        %v1072 = vadd.f32 %v959, %v1006
        %v1073 = vadd.f32 %v960, %v1010
        %v1074 = vadd.f32 %v961, %v1014
        %v1075 = vadd.f32 %v962, %v1006
        %v1076 = vadd.f32 %v963, %v1010
        %v1077 = vadd.f32 %v964, %v1014
        %v1078 = vadd.f32 %v965, %v1006
        %v1079 = vadd.f32 %v966, %v1010
        %v1080 = vadd.f32 %v967, %v1014
        %v1081 = vadd.f32 %v968, %v1006
        %v1082 = vadd.f32 %v969, %v1010
        %v1083 = vadd.f32 %v970, %v1014
        %v1084 = vadd.f32 %v971, %v1006
        %v1085 = vadd.f32 %v972, %v1010
        %v1086 = vadd.f32 %v973, %v1014
        %v1087 = vadd.f32 %v974, %v1006
        %v1088 = vadd.f32 %v975, %v1010
        %v1089 = vadd.f32 %v976, %v1014
        %v1090 = vadd.f32 %v977, %v1006
        %v1091 = vadd.f32 %v978, %v1010
        %v1092 = vadd.f32 %v979, %v1014
        %v1093 = vadd.f32 %v980, %v1006
        %v1094 = vadd.f32 %v981, %v1010
        %v1095 = vadd.f32 %v982, %v1014
        %v1096 = vadd.f32 %v983, %v1006
        %v1097 = vadd.f32 %v984, %v1010
        %v1098 = vadd.f32 %v985, %v1014
        %v1099 = vadd.f32 %v986, %v1006
        %v1100 = vadd.f32 %v987, %v1010
        %v1101 = vadd.f32 %v988, %v1014
        %v1102 = vadd.f32 %v989, %v1006
        %v1103 = vadd.f32 %v990, %v1010
        %v1104 = vadd.f32 %v991, %v1014
        %v1105 = vadd.f32 %v992, %v1006
        %v1106 = vadd.f32 %v993, %v1010
        %v1107 = vadd.f32 %v994, %v1014
        %v1108 = vadd.f32 %v995, %v1006
        %v1109 = vadd.f32 %v996, %v1010
        %v1110 = vadd.f32 %v997, %v1014
        %v1111 = vadd.f32 %v998, %v1006
        %v1112 = vadd.f32 %v999, %v1010
        %v1113 = vadd.f32 %v1000, %v1014
        %1114 = vst [vmem:[%s242] sm:$0xff] %v1018
        %1115 = vst [vmem:[%s242 + $0x8] sm:$0xff] %v1019
        %1116 = vst [vmem:[%s242 + $0x10] sm:$0xff] %v1020
        %1117 = vst [vmem:[%s242 + $0x18] sm:$0xff] %v1021
        %1118 = vst [vmem:[%s242 + $0x20] sm:$0xff] %v1022
        %1119 = vst [vmem:[%s242 + $0x28] sm:$0xff] %v1023
        %1120 = vst [vmem:[%s242 + $0x30] sm:$0xff] %v1024
        %1121 = vst [vmem:[%s242 + $0x38] sm:$0xff] %v1025
        %1122 = vst [vmem:[%s242 + $0x40] sm:$0xff] %v1026
        %1123 = vst [vmem:[%s242 + $0x48] sm:$0xff] %v1027
        %1124 = vst [vmem:[%s242 + $0x50] sm:$0xff] %v1028
        %1125 = vst [vmem:[%s242 + $0x58] sm:$0xff] %v1029
        %1126 = vst [vmem:[%s242 + $0x60] sm:$0xff] %v1030
        %1127 = vst [vmem:[%s242 + $0x68] sm:$0xff] %v1031
        %1128 = vst [vmem:[%s242 + $0x70] sm:$0xff] %v1032
        %1129 = vst [vmem:[%s242 + $0x78] sm:$0xff] %v1033
        %1130 = vst [vmem:[%s242 + $0x80] sm:$0xff] %v1034
        %1131 = vst [vmem:[%s242 + $0x88] sm:$0xff] %v1035
        %1132 = vst [vmem:[%s242 + $0x90] sm:$0xff] %v1036
        %1133 = vst [vmem:[%s242 + $0x98] sm:$0xff] %v1037
        %1134 = vst [vmem:[%s242 + $0xa0] sm:$0xff] %v1038
        %1135 = vst [vmem:[%s242 + $0xa8] sm:$0xff] %v1039
        %1136 = vst [vmem:[%s242 + $0xb0] sm:$0xff] %v1040
        %1137 = vst [vmem:[%s242 + $0xb8] sm:$0xff] %v1041
        %1138 = vst [vmem:[%s242 + $0xc0] sm:$0xff] %v1042
        %1139 = vst [vmem:[%s242 + $0xc8] sm:$0xff] %v1043
        %1140 = vst [vmem:[%s242 + $0xd0] sm:$0xff] %v1044
        %1141 = vst [vmem:[%s242 + $0xd8] sm:$0xff] %v1045
        %1142 = vst [vmem:[%s242 + $0xe0] sm:$0xff] %v1046
        %1143 = vst [vmem:[%s242 + $0xe8] sm:$0xff] %v1047
        %1144 = vst [vmem:[%s242 + $0xf0] sm:$0xff] %v1048
        %1145 = vst [vmem:[%s242 + $0xf8] sm:$0xff] %v1049
        %1146 = vst [vmem:[%s242 + $0x100] sm:$0xff] %v1050
        %1147 = vst [vmem:[%s242 + $0x108] sm:$0xff] %v1051
        %1148 = vst [vmem:[%s242 + $0x110] sm:$0xff] %v1052
        %1149 = vst [vmem:[%s242 + $0x118] sm:$0xff] %v1053
        %1150 = vst [vmem:[%s242 + $0x120] sm:$0xff] %v1054
        %1151 = vst [vmem:[%s242 + $0x128] sm:$0xff] %v1055
        %1152 = vst [vmem:[%s242 + $0x130] sm:$0xff] %v1056
        %1153 = vst [vmem:[%s242 + $0x138] sm:$0xff] %v1057
        %1154 = vst [vmem:[%s242 + $0x140] sm:$0xff] %v1058
        %1155 = vst [vmem:[%s242 + $0x148] sm:$0xff] %v1059
        %1156 = vst [vmem:[%s242 + $0x150] sm:$0xff] %v1060
        %1157 = vst [vmem:[%s242 + $0x158] sm:$0xff] %v1061
        %1158 = vst [vmem:[%s242 + $0x160] sm:$0xff] %v1062
        %1159 = vst [vmem:[%s242 + $0x168] sm:$0xff] %v1063
        %1160 = vst [vmem:[%s242 + $0x170] sm:$0xff] %v1064
        %1161 = vst [vmem:[%s242 + $0x178] sm:$0xff] %v1065
        %1162 = vst [vmem:[%s242 + $0x180] sm:$0xff] %v1066
        %1163 = vst [vmem:[%s242 + $0x188] sm:$0xff] %v1067
        %1164 = vst [vmem:[%s242 + $0x190] sm:$0xff] %v1068
        %1165 = vst [vmem:[%s242 + $0x198] sm:$0xff] %v1069
        %1166 = vst [vmem:[%s242 + $0x1a0] sm:$0xff] %v1070
        %1167 = vst [vmem:[%s242 + $0x1a8] sm:$0xff] %v1071
        %1168 = vst [vmem:[%s242 + $0x1b0] sm:$0xff] %v1072
        %1169 = vst [vmem:[%s242 + $0x1b8] sm:$0xff] %v1073
        %1170 = vst [vmem:[%s242 + $0x1c0] sm:$0xff] %v1074
        %1171 = vst [vmem:[%s242 + $0x1c8] sm:$0xff] %v1075
        %1172 = vst [vmem:[%s242 + $0x1d0] sm:$0xff] %v1076
        %1173 = vst [vmem:[%s242 + $0x1d8] sm:$0xff] %v1077
        %1174 = vst [vmem:[%s242 + $0x1e0] sm:$0xff] %v1078
        %1175 = vst [vmem:[%s242 + $0x1e8] sm:$0xff] %v1079
        %1176 = vst [vmem:[%s242 + $0x1f0] sm:$0xff] %v1080
        %1177 = vst [vmem:[%s242 + $0x1f8] sm:$0xff] %v1081
        %1178 = vst [vmem:[%s242 + $0x200] sm:$0xff] %v1082
        %1179 = vst [vmem:[%s242 + $0x208] sm:$0xff] %v1083
        %1180 = vst [vmem:[%s242 + $0x210] sm:$0xff] %v1084
        %1181 = vst [vmem:[%s242 + $0x218] sm:$0xff] %v1085
        %1182 = vst [vmem:[%s242 + $0x220] sm:$0xff] %v1086
        %1183 = vst [vmem:[%s242 + $0x228] sm:$0xff] %v1087
        %1184 = vst [vmem:[%s242 + $0x230] sm:$0xff] %v1088
        %1185 = vst [vmem:[%s242 + $0x238] sm:$0xff] %v1089
        %1186 = vst [vmem:[%s242 + $0x240] sm:$0xff] %v1090
        %1187 = vst [vmem:[%s242 + $0x248] sm:$0xff] %v1091
        %1188 = vst [vmem:[%s242 + $0x250] sm:$0xff] %v1092
        %1189 = vst [vmem:[%s242 + $0x258] sm:$0xff] %v1093
        %1190 = vst [vmem:[%s242 + $0x260] sm:$0xff] %v1094
        %1191 = vst [vmem:[%s242 + $0x268] sm:$0xff] %v1095
        %1192 = vst [vmem:[%s242 + $0x270] sm:$0xff] %v1096
        %1193 = vst [vmem:[%s242 + $0x278] sm:$0xff] %v1097
        %1194 = vst [vmem:[%s242 + $0x280] sm:$0xff] %v1098
        %1195 = vst [vmem:[%s242 + $0x288] sm:$0xff] %v1099
        %1196 = vst [vmem:[%s242 + $0x290] sm:$0xff] %v1100
        %1197 = vst [vmem:[%s242 + $0x298] sm:$0xff] %v1101
        %1198 = vst [vmem:[%s242 + $0x2a0] sm:$0xff] %v1102
        %1199 = vst [vmem:[%s242 + $0x2a8] sm:$0xff] %v1103
        %1200 = vst [vmem:[%s242 + $0x2b0] sm:$0xff] %v1104
        %1201 = vst [vmem:[%s242 + $0x2b8] sm:$0xff] %v1105
        %1202 = vst [vmem:[%s242 + $0x2c0] sm:$0xff] %v1106
        %1203 = vst [vmem:[%s242 + $0x2c8] sm:$0xff] %v1107
        %1204 = vst [vmem:[%s242 + $0x2d0] sm:$0xff] %v1108
        %1205 = vst [vmem:[%s242 + $0x2d8] sm:$0xff] %v1109
        %1206 = vst [vmem:[%s242 + $0x2e0] sm:$0xff] %v1110
        %1207 = vst [vmem:[%s242 + $0x2e8] sm:$0xff] %v1111
        %1208 = vst [vmem:[%s242 + $0x2f0] sm:$0xff] %v1112
        %1209 = vst [vmem:[%s242 + $0x2f8] sm:$0xff] %v1113
        %s1210 = sand.u32 %s119, 1
        %s1211 = scalar_lea.sflag [#allocation4], %s1210
        %s1212 = sand.u32 %s119, 1
        %s1213 = smul.addr %s1212, 768
        %s1214 = scalar_lea.vmem [#allocation8], %s1213
        // Predicated region
        $region49: #{tpu_custom_call.1} parent=35 // pred_check
          %p1215 = pneg %p129
        $region50: #{tpu_custom_call.1} parent=35 // pred_check_branch
          %1217 = sbr.rel (%p1215) target = $region52
        $region51: #{tpu_custom_call.1} parent=35 // pred_region
          %s1218 = smul.u32 32, %s22
          %s1220 = ssub.s32 12288, 12288
          %1221 = vsyncadd %s1211, %s1220
          %s1222 = smul.addr %s1218, 3
          %s1223 = smul.addr %s1222, 128
          %s1224 = scalar_lea.hbm %s4, %s1223
          %s1225 = sshll.u32 %s1214, 4
          %s1226 = int_to_ptr.vmem [resolvable:$true] %s1225
          %1231 = dma.vmem_to_hbm [thread:$0]  %s1226, 12288, %s1224, %s1211, 384, 384, 24
        $region52: #{tpu_custom_call.1} parent=35 // pred_fallthru
          _
      $region36: #{tpu_custom_call.1} parent=5 // pred_fallthru
        _
      %p1232 = scmp.le.s32.totalorder 2, %s17
      // Predicated region
      $region53: #{tpu_custom_call.1} parent=5 // pred_check
        %p1233 = pneg %p1232
      $region54: #{tpu_custom_call.1} parent=5 // pred_check_branch
        %1235 = sbr.rel (%p1233) target = $region56
      $region55: #{tpu_custom_call.1} parent=5 // pred_region
        %s1236 = ssub.s32 %s17, 2
        // Predicated region
        $region57: #{tpu_custom_call.1} parent=55 // pred_check
          %p1237 = pneg %p135
        $region58: #{tpu_custom_call.1} parent=55 // pred_check_branch
          %1239 = sbr.rel (%p1237) target = $region60
        $region59: #{tpu_custom_call.1} parent=55 // pred_region
          %s1240 = sand.u32 %s120, 1
          %s1241 = scalar_lea.sflag [#allocation4], %s1240
          %s1242 = sand.u32 %s120, 1
          %s1243 = smul.addr %s1242, 768
          %s1244 = scalar_lea.vmem [#allocation8], %s1243
          %1245 = dma.done %s1241, 12288
        $region60: #{tpu_custom_call.1} parent=55 // pred_fallthru
          _
      $region56: #{tpu_custom_call.1} parent=5 // pred_fallthru
        _
    $region6: #{tpu_custom_call.1} parent=1 // loop_footer
      %s21 = sadd.s32 1, %s17
    $region7: #{tpu_custom_call.1} parent=1 // loop_footer_branch
      %16 = sbr.rel target = $region3
    $region8: #{tpu_custom_call.1} parent=1 // loop_exit
      _
    %1246 = vsyncpa [#allocation3], 1
    %s1247 = scalar_lea.sflag [#allocation3], 1
    %1248 = vsyncpa %s1247, 1
    %1249 = vsyncpa [#allocation6], 1
    %1250 = vsyncpa [#allocation4], 1
    %s1251 = scalar_lea.sflag [#allocation4], 1
    %1252 = vsyncpa %s1251, 1

</llo_original>
